<compile_context>
chip_gen: v7x
topology: tpu7x:2x2x1
jax: 0.10.0
libtpu: 0.0.40
codegen_flags: <defaults>
</compile_context>

<pallas_src>
from typing import NamedTuple

import jax
import jax.numpy as jnp
from jax.experimental import pallas as pl
from jax.experimental.pallas import tpu as pltpu

NEG_SLOPE = 0.01  # F.leaky_relu default negative_slope

_SUBLANE = {4: 8, 2: 16, 1: 32}  # min second-to-last tile granule by itemsize


def _sublane(dtype):
    isz = jnp.dtype(dtype).itemsize
    if isz not in _SUBLANE:
        raise ValueError(f"unsupported dtype for LinearBlock kernel: {dtype}")
    return _SUBLANE[isz]


def _round_up(v, m):
    return ((v + m - 1) // m) * m


def _leaky_relu(y):
    return jnp.where(y >= 0, y, NEG_SLOPE * y)


def _dot(x_tile, w_tile):
    # x_tile: [tm, tk], w_tile: [tk, tn] -> [tm, tn] f32 (MXU, f32 accumulate).
    if x_tile.dtype != w_tile.dtype:
        x_tile = x_tile.astype(w_tile.dtype)
    return jnp.dot(x_tile, w_tile, preferred_element_type=jnp.float32)


def _kernel_f32_out(x_ref, w_ref, o_ref):
    """f32 output: accumulate directly into the VMEM-resident output block."""
    k = pl.program_id(2)

    @pl.when(k == 0)
    def _():
        o_ref[...] = jnp.zeros_like(o_ref)

    o_ref[...] += _dot(x_ref[...], w_ref[...])

    @pl.when(k == pl.num_programs(2) - 1)
    def _():
        o_ref[...] = _leaky_relu(o_ref[...])


def _kernel_acc_scratch(x_ref, w_ref, o_ref, acc_ref):
    """Narrow output dtype: accumulate in a f32 scratch, cast on the last k."""
    k = pl.program_id(2)

    @pl.when(k == 0)
    def _():
        acc_ref[...] = jnp.zeros_like(acc_ref)

    acc_ref[...] += _dot(x_ref[...], w_ref[...])

    @pl.when(k == pl.num_programs(2) - 1)
    def _():
        o_ref[...] = _leaky_relu(acc_ref[...]).astype(o_ref.dtype)


# ----------------------------- tile planning --------------------------------

def _plan_k(K, tk_cap):
    """Even-split K into tk-sized steps (tk multiple of 128 when K > tk_cap)."""
    if K <= tk_cap:
        return K, K, 1                       # tk == Kp == K, single k step
    ksteps = pl.cdiv(K, tk_cap)
    tk = _round_up(pl.cdiv(K, ksteps), 128)
    grid_k = pl.cdiv(K, tk)
    return tk, tk * grid_k, grid_k


def _plan_dim(D, cap, align):
    """Even-split a parallel dim; block == full dim when D <= cap (always legal)."""
    if D <= cap:
        return D
    steps = pl.cdiv(D, cap)
    return _round_up(pl.cdiv(D, steps), align)


class PreparedWeight(NamedTuple):
    w_t: jax.Array       # [Kp, N]: transposed, K zero-padded, optionally cast
    input_dim: int       # K
    output_dim: int      # N
    padded_k: int        # Kp
    tk: int
    grid_k: int


def prepare_weight(weight, *, tk_cap=2048, compute_dtype=None):
    """One-time weight preparation (cache at module init; constant across calls).

    weight: [output_dim, input_dim] (PyTorch nn.Linear layout).
    """
    N, K = weight.shape
    tk, Kp, grid_k = _plan_k(K, tk_cap)
    w_t = jnp.asarray(weight).T                      # [K, N] -> MXU-native RHS
    if compute_dtype is not None:
        w_t = w_t.astype(compute_dtype)              # opt-in (e.g. bf16 on v6e+)
    if Kp != K:
        w_t = jnp.pad(w_t, ((0, Kp - K), (0, 0)))    # zero-fill reduction axis
    return PreparedWeight(jnp.asarray(w_t), K, N, Kp, tk, grid_k)


def linear_block_forward(x, prep, *, tm_cap=None, tn_cap=512):
    """leaky_relu(x @ W.T) with W prepared by `prepare_weight`.

    Dropout with p=0.0 (or eval mode) is the identity, so it is elided.
    batchnorm=False (module default) -> no BN layer.
    """
    K, N = prep.input_dim, prep.output_dim
    Kp, tk, grid_k = prep.padded_k, prep.tk, prep.grid_k

    orig_shape = x.shape
    if x.ndim != 2:
        x = x.reshape(-1, orig_shape[-1])
    M = x.shape[0]
    assert x.shape[1] == K, "input_dim mismatch between x and weight"

    out_dtype = x.dtype
    sub = _sublane(out_dtype)

    # Only the reduction axis is ever zero-padded; M/N raggedness is safe
    # because those rows/cols are never written to the [M, N] output.
    if Kp != K:
        x = jnp.pad(x, ((0, 0), (0, Kp - K)))

    # Even-split tiles; rebalance tm toward tn when both M and N are large.
    if tm_cap is None:
        tm_cap = 512 if (M >= 512 and N >= 512) else 256
    tm = _plan_dim(M, tm_cap, sub)
    tn = _plan_dim(N, tn_cap, 128)
    grid_m, grid_n = pl.cdiv(M, tm), pl.cdiv(N, tn)

    # v7x has 2 TensorCores: ensure >=2 steps along a "parallel" axis whenever
    # the shape allows (cheap on 1-TC chips, up to ~2x on small v7x grids).
    if grid_m * grid_n == 1:
        if N >= 256:
            tn = _round_up(pl.cdiv(N, 2), 128)
            grid_n = pl.cdiv(N, tn)
        elif M >= 2 * sub:
            tm = _round_up(pl.cdiv(M, 2), sub)
            grid_m = pl.cdiv(M, tm)

    grid = (grid_m, grid_n, grid_k)

    out_is_f32 = out_dtype == jnp.float32
    kernel = _kernel_f32_out if out_is_f32 else _kernel_acc_scratch
    scratch = [] if out_is_f32 else [pltpu.VMEM((tm, tn), jnp.float32)]

    x_isz = jnp.dtype(x.dtype).itemsize
    w_isz = jnp.dtype(prep.w_t.dtype).itemsize
    o_isz = jnp.dtype(out_dtype).itemsize

    def run(deep_weight_buffer):
        w_idx = lambda i, j, k: (k, j)
        w_spec = None
        if deep_weight_buffer and hasattr(pl, "Buffered"):
            try:
                w_spec = pl.BlockSpec((tk, tn), w_idx,
                                      pipeline_mode=pl.Buffered(3))
            except TypeError:          # BlockSpec without pipeline_mode support
                w_spec = None
        depth = 3 if w_spec is not None else 2
        if w_spec is None:
            w_spec = pl.BlockSpec((tk, tn), w_idx)

        vmem_bytes = (
            2 * tm * tk * x_isz              # double-buffered x blocks
            + depth * tk * tn * w_isz        # weight blocks (2- or 3-deep)
            + 2 * tm * tn * o_isz            # output blocks
            + (0 if out_is_f32 else tm * tn * 4)
            + 16 * 1024 * 1024               # headroom for Mosaic internals
        )
        vmem_limit = int(min(48 * 1024 * 1024,        # stay below v7x's 64 MiB
                             max(32 * 1024 * 1024, vmem_bytes)))

        return pl.pallas_call(
            kernel,
            out_shape=jax.ShapeDtypeStruct((M, N), out_dtype),
            grid_spec=pltpu.PrefetchScalarGridSpec(
                num_scalar_prefetch=0,
                grid=grid,
                in_specs=[
                    pl.BlockSpec((tm, tk), lambda i, j, k: (i, k)),   # x
                    w_spec,                                           # W.T [Kp,N]
                ],
                out_specs=pl.BlockSpec((tm, tn), lambda i, j, k: (i, j)),
                scratch_shapes=scratch,
            ),
            compiler_params=pltpu.CompilerParams(
                dimension_semantics=("parallel", "parallel", "arbitrary"),
                vmem_limit_bytes=vmem_limit,
            ),
        )(x, prep.w_t)

    if grid_k > 1:
        try:
            out = run(True)       # 3-deep weight buffer hides k-step DMA bubbles
        except Exception:         # fall back if deep buffering is unsupported
            out = run(False)
    else:
        out = run(False)

    if len(orig_shape) != 2:
        out = out.reshape(*orig_shape[:-1], N)
    return out


class LinearBlockTPU:
    """Pallas-TPU LinearBlock: dropout(p=0/eval) -> Linear(bias=False) -> leaky_relu.

    Weight preparation (transpose / K pad / optional cast) happens once here,
    not per forward call.
    """

    # TODO(synk): batchnorm=True branch (BatchNorm1d) and training-mode dropout
    # (p > 0) are not implemented since the module defaults are batchnorm=False,
    # dropout=0.0 (identity in eval mode).
    def __init__(self, weight, *, compute_dtype=None, tk_cap=2048):
        self.prep = prepare_weight(weight, tk_cap=tk_cap,
                                   compute_dtype=compute_dtype)

    def __call__(self, x, **kwargs):
        return linear_block_forward(x, self.prep, **kwargs)


if __name__ == "__main__":
    key = jax.random.PRNGKey(0)
    k1, k2, k3, k4, k5, k6 = jax.random.split(key, 6)

    def ref_forward(x, w):
        y = x.astype(jnp.float32) @ w.astype(jnp.float32).T
        return jnp.where(y >= 0, y, NEG_SLOPE * y)

    # Case 1: tiny, non-aligned shapes -> full-dim blocks, single grid step, f32.
    batch, input_dim, output_dim = 2, 32, 48
    x1 = jax.random.normal(k1, (batch, input_dim), dtype=jnp.float32)
    bound = 1.0 / (input_dim ** 0.5)
    w1 = jax.random.uniform(k2, (output_dim, input_dim), dtype=jnp.float32,
                            minval=-bound, maxval=bound)
    blk1 = LinearBlockTPU(w1)
    out1 = jax.block_until_ready(blk1(x1))
    assert out1.shape == (batch, output_dim)
    assert jnp.allclose(out1, ref_forward(x1, w1), atol=1e-5, rtol=1e-5)

    # Case 2: multi-step K reduction (tk_cap override) + parallel-axis split
    # (N=256 -> two 128-wide output blocks), f32 accumulate-into-output.
    batch, input_dim, output_dim = 8, 512, 256
    x2 = jax.random.normal(k3, (batch, input_dim), dtype=jnp.float32)
    bound = 1.0 / (input_dim ** 0.5)
    w2 = jax.random.uniform(k4, (output_dim, input_dim), dtype=jnp.float32,
                            minval=-bound, maxval=bound)
    blk2 = LinearBlockTPU(w2, tk_cap=128)
    out2 = jax.block_until_ready(blk2(x2))
    assert out2.shape == (batch, output_dim)
    assert jnp.allclose(out2, ref_forward(x2, w2), atol=1e-4, rtol=1e-4)

    # Case 3: bf16 inputs (f32 scratch-accumulator kernel path).
    blk3 = LinearBlockTPU(w2.astype(jnp.bfloat16), tk_cap=128)
    out3 = jax.block_until_ready(blk3(x2.astype(jnp.bfloat16)))
    assert out3.dtype == jnp.bfloat16
    assert jnp.allclose(
        out3.astype(jnp.float32),
        ref_forward(x2.astype(jnp.bfloat16), w2.astype(jnp.bfloat16)),
        atol=5e-2, rtol=5e-2)

    # Case 4: ragged M and N last blocks (no wrapper-side M/N padding), f32.
    batch, input_dim, output_dim = 10, 64, 300
    x4 = jax.random.normal(k5, (batch, input_dim), dtype=jnp.float32)
    bound = 1.0 / (input_dim ** 0.5)
    w4 = jax.random.uniform(k6, (output_dim, input_dim), dtype=jnp.float32,
                            minval=-bound, maxval=bound)
    blk4 = LinearBlockTPU(w4)
    out4 = jax.block_until_ready(blk4(x4, tm_cap=8, tn_cap=128))
    assert out4.shape == (batch, output_dim)
    assert jnp.allclose(out4, ref_forward(x4, w4), atol=1e-4, rtol=1e-4)

    # Case 5: opt-in bf16 compute (v6e/v7x MXU-native) with f32 input/output.
    blk5 = LinearBlockTPU(w2, compute_dtype=jnp.bfloat16, tk_cap=128)
    out5 = jax.block_until_ready(blk5(x2))
    assert out5.dtype == jnp.float32
    assert jnp.allclose(out5, ref_forward(x2, w2), atol=5e-2, rtol=5e-2)

    print("KERNEL_OK")
</pallas_src>

<mosaic_0001>
module attributes {stable_mosaic.version = 11 : i64} {
  func.func @_kernel_f32_out(%arg0: i32, %arg1: i32, %arg2: i32, %arg3: memref<2x32xf32, #tpu.memory_space<vmem>>, %arg4: memref<32x48xf32, #tpu.memory_space<vmem>>, %arg5: memref<2x48xf32, #tpu.memory_space<vmem>>) attributes {dimension_semantics = [#tpu.dimension_semantics<parallel>, #tpu.dimension_semantics<parallel>, #tpu.dimension_semantics<arbitrary>], iteration_bounds = array<i64: 1, 1, 1>, scalar_prefetch = 0 : i64, scratch_operands = 0 : i64, tpu.core_type = #tpu.core_type<tc>, window_params = [{transform_indices = @transform_0, window_bounds = array<i64: 2, 32>}, {transform_indices = @transform_1, window_bounds = array<i64: 32, 48>}, {transform_indices = @transform_2, window_bounds = array<i64: 2, 48>}]} {
    %c0_i32 = arith.constant 0 : i32
    %0 = arith.cmpi eq, %arg2, %c0_i32 : i32
    %1 = arith.extui %0 : i1 to i32
    %c0_i32_0 = arith.constant 0 : i32
    %2 = arith.cmpi ne, %1, %c0_i32_0 : i32
    scf.if %2 {
      %cst_10 = arith.constant 0.000000e+00 : f32
      %12 = vector.broadcast %cst_10 : f32 to vector<2x48xf32>
      %c0_11 = arith.constant 0 : index
      %c0_12 = arith.constant 0 : index
      %13 = vector.load %arg5[%c0_11, %c0_12] : memref<2x48xf32, #tpu.memory_space<vmem>>, vector<2x48xf32>
      tpu.vector_store %arg5[%c0_11, %c0_12], %12 {strides = array<i32>} : memref<2x48xf32, #tpu.memory_space<vmem>>, vector<2x48xf32>,
    } else {
    }
    %c0 = arith.constant 0 : index
    %c0_1 = arith.constant 0 : index
    %3 = vector.load %arg5[%c0, %c0_1] : memref<2x48xf32, #tpu.memory_space<vmem>>, vector<2x48xf32>
    %c0_2 = arith.constant 0 : index
    %c0_3 = arith.constant 0 : index
    %4 = vector.load %arg3[%c0_2, %c0_3] : memref<2x32xf32, #tpu.memory_space<vmem>>, vector<2x32xf32>
    %c0_4 = arith.constant 0 : index
    %c0_5 = arith.constant 0 : index
    %5 = vector.load %arg4[%c0_4, %c0_5] : memref<32x48xf32, #tpu.memory_space<vmem>>, vector<32x48xf32>
    %cst = arith.constant dense<0.000000e+00> : vector<2x48xf32>
    %6 = tpu.matmul %4, %5, %cst {dimension_numbers = #tpu.dot_dimension_numbers<[1], [0], [0], [1], [0, 0, 1, 1], [], []>} : vector<2x32xf32>, vector<32x48xf32>, vector<2x48xf32> -> vector<2x48xf32>
    %7 = arith.addf %3, %6 : vector<2x48xf32>
    %c0_6 = arith.constant 0 : index
    %c0_7 = arith.constant 0 : index
    %8 = vector.load %arg5[%c0_6, %c0_7] : memref<2x48xf32, #tpu.memory_space<vmem>>, vector<2x48xf32>
    tpu.vector_store %arg5[%c0_6, %c0_7], %7 {strides = array<i32>} : memref<2x48xf32, #tpu.memory_space<vmem>>, vector<2x48xf32>,
    %c0_i32_8 = arith.constant 0 : i32
    %9 = arith.cmpi eq, %arg2, %c0_i32_8 : i32
    %10 = arith.extui %9 : i1 to i32
    %c0_i32_9 = arith.constant 0 : i32
    %11 = arith.cmpi ne, %10, %c0_i32_9 : i32
    scf.if %11 {
      %c0_10 = arith.constant 0 : index
      %c0_11 = arith.constant 0 : index
      %12 = vector.load %arg5[%c0_10, %c0_11] : memref<2x48xf32, #tpu.memory_space<vmem>>, vector<2x48xf32>
      %cst_12 = arith.constant 0.000000e+00 : f32
      %13 = vector.broadcast %cst_12 : f32 to vector<2x48xf32>
      %14 = arith.cmpf oge, %12, %13 : vector<2x48xf32>
      %cst_13 = arith.constant 0.00999999977 : f32
      %15 = vector.broadcast %cst_13 : f32 to vector<2x48xf32>
      %16 = arith.mulf %15, %12 : vector<2x48xf32>
      %17 = arith.select %14, %12, %16 : vector<2x48xi1>, vector<2x48xf32>
      %c0_14 = arith.constant 0 : index
      %c0_15 = arith.constant 0 : index
      %18 = vector.load %arg5[%c0_14, %c0_15] : memref<2x48xf32, #tpu.memory_space<vmem>>, vector<2x48xf32>
      tpu.vector_store %arg5[%c0_14, %c0_15], %17 {strides = array<i32>} : memref<2x48xf32, #tpu.memory_space<vmem>>, vector<2x48xf32>,
    } else {
    }
    return
  }
  func.func @transform_0(%arg0: i32, %arg1: i32, %arg2: i32) -> (i32, i32) {
    %c0_i32 = arith.constant 0 : i32
    return %arg0, %arg2 : i32, i32
  }
  func.func @transform_1(%arg0: i32, %arg1: i32, %arg2: i32) -> (i32, i32) {
    %c0_i32 = arith.constant 0 : i32
    return %arg2, %arg1 : i32, i32
  }
  func.func @transform_2(%arg0: i32, %arg1: i32, %arg2: i32) -> (i32, i32) {
    %c0_i32 = arith.constant 0 : i32
    return %arg0, %arg1 : i32, i32
  }
}

</mosaic_0001>

<llo_original>
// kernel: tpu_custom_call.1
$region0: #{tpu_custom_call.1}
  #allocation0 [shape = 'u32[]', space=smem, size = 0x4, offset = 0x4, fixed_abs, tag = 'smem constant byte address 0x4 - core index']
  #allocation1 [shape = 'u32[144,128]{1,0:T(1,128)}', space=vmem, size = 0x12000, scoped, tag = 'internal scratch']
  %s0 = inlined_call_operand.hbm [shape: f32[2,32], index: 0, kind: input, shape index: {}]
  %s1 = inlined_call_operand.hbm [shape: f32[32,48], index: 1, kind: input, shape index: {}]
  %s2 = inlined_call_operand.hbm [shape: f32[2,48], index: 2, kind: output, shape index: {}]
  %s3 = sld [smem:[#allocation0]]
  $region34: #{tpu_custom_call.1} parent=0
    _
  %s5 = ssub.s32 1, %s3
  %s6 = scalar_select 0, %s5, %s3
  $region1: #{tpu_custom_call.1} parent=0
    #allocation2 [shape = 'u8[1024]{0}', space=vmem, size = 0x400, scoped, tag = 'input window, operand 0, single buffered']
    #allocation3 [shape = 's32[1]{0}', space=sflag, size = 0x4, scoped, tag = 'scoped memory for tpu_custom_call.1']
    #allocation4 [shape = 's32[1]{0}', space=sflag, size = 0x4, scoped, tag = 'scoped memory for tpu_custom_call.1']
    #allocation5 [shape = 'u8[16384]{0}', space=vmem, size = 0x4000, scoped, tag = 'input window, operand 1, single buffered']
    #allocation6 [shape = 's32[1]{0}', space=sflag, size = 0x4, scoped, tag = 'scoped memory for tpu_custom_call.1']
    #allocation7 [shape = 'u8[1024]{0}', space=vmem, size = 0x400, scoped, tag = 'output window, operand 0, single buffered']
    %7 = vsyncpa [#allocation3], 0
    %8 = vsyncpa [#allocation6], 0
    %9 = vsyncpa [#allocation4], 0
    // Predicated region
    $region2: #{tpu_custom_call.1} parent=1 // pred_check
      _
    $region3: #{tpu_custom_call.1} parent=1 // pred_check_branch
      %11 = sbr.rel (0) target = $region5
    $region4: #{tpu_custom_call.1} parent=1 // pred_region
      %s13 = ssub.s32 32, 32
      %14 = vsyncadd [#allocation3], %s13
      %s16 = sshll.u32 [#allocation2], 4
      %s17 = int_to_ptr.vmem [resolvable:$true] %s16
      %19 = dma.hbm_to_vmem [thread:$0]  %s0, 32, %s17, [#allocation3]
    $region5: #{tpu_custom_call.1} parent=1 // pred_fallthru
      _
    // Predicated region
    $region6: #{tpu_custom_call.1} parent=1 // pred_check
      _
    $region7: #{tpu_custom_call.1} parent=1 // pred_check_branch
      %21 = sbr.rel (0) target = $region9
    $region8: #{tpu_custom_call.1} parent=1 // pred_region
      %s23 = ssub.s32 512, 512
      %24 = vsyncadd [#allocation6], %s23
      %s25 = sshll.u32 [#allocation5], 4
      %s26 = int_to_ptr.vmem [resolvable:$true] %s25
      %31 = dma.hbm_to_vmem [thread:$0]  %s1, 512, %s26, [#allocation6], 128, 128, 8
    $region9: #{tpu_custom_call.1} parent=1 // pred_fallthru
      _
    // Predicated region
    $region10: #{tpu_custom_call.1} parent=1 // pred_check
      _
    $region11: #{tpu_custom_call.1} parent=1 // pred_check_branch
      %33 = sbr.rel (0) target = $region13
    $region12: #{tpu_custom_call.1} parent=1 // pred_region
      %34 = dma.done [#allocation3], 32
    $region13: #{tpu_custom_call.1} parent=1 // pred_fallthru
      _
    // Predicated region
    $region14: #{tpu_custom_call.1} parent=1 // pred_check
      _
    $region15: #{tpu_custom_call.1} parent=1 // pred_check_branch
      %36 = sbr.rel (0) target = $region17
    $region16: #{tpu_custom_call.1} parent=1 // pred_region
      %37 = dma.done [#allocation6], 512
    $region17: #{tpu_custom_call.1} parent=1 // pred_fallthru
      _
    %p38 = scmp.eq.s32.totalorder 0, 0
    // Predicated region
    $region18: #{tpu_custom_call.1} parent=1 // pred_check
      %p39 = pneg %p38
    $region19: #{tpu_custom_call.1} parent=1 // pred_check_branch
      %41 = sbr.rel (%p39) target = $region21
    $region20: #{tpu_custom_call.1} parent=1 // pred_region
      %vm42 = vcmask 386048
      %43 = vst.msk [vmem:[#allocation7] sm:$0x3] %vm42, 0.0
    $region21: #{tpu_custom_call.1} parent=1 // pred_fallthru
      _
    %v44 = vld [vmem:[#allocation7] sm:$0x3]
    %v45 = vld [vmem:[#allocation2] sm:$0x3]
    %v46 = vld [vmem:[#allocation5] sm:$0xff]
    %v47 = vld [vmem:[#allocation5 + $0x8] sm:$0xff]
    %v48 = vld [vmem:[#allocation5 + $0x10] sm:$0xff]
    %v49 = vld [vmem:[#allocation5 + $0x18] sm:$0xff]
    %vm50 = vcmask 261120
    %v52 = vsel %vm50, %v45, 0
    %54 = vmatprep.subr.mxu0 0.0
    %55 = vmatpush1.msra.mxu0 %v46
    %56 = vmatprep.subr.mxu0 0.0
    %57 = vmatpush1.msra.mxu0 %v47
    %58 = vmatprep.subr.mxu0 0.0
    %59 = vmatpush1.msra.mxu0 %v48
    %60 = vmatprep.subr.mxu0 0.0
    %61 = vmatpush1.msra.mxu0 %v49
    %62 = vmatprep.subr.mxu0 0.0
    %63 = vmatpush1.msra.mxu0 0.0
    %64 = vmatprep.subr.mxu0 0.0
    %65 = vmatpush1.msra.mxu0 0.0
    %66 = vmatprep.subr.mxu0 0.0
    %67 = vmatpush1.msra.mxu0 0.0
    %68 = vmatprep.subr.mxu0 0.0
    %69 = vmatpush1.msra.mxu0 0.0
    %70 = vmatprep.subr.mxu0 0.0
    %71 = vmatpush1.msra.mxu0 0.0
    %72 = vmatprep.subr.mxu0 0.0
    %73 = vmatpush1.msra.mxu0 0.0
    %74 = vmatprep.subr.mxu0 0.0
    %75 = vmatpush1.msra.mxu0 0.0
    %76 = vmatprep.subr.mxu0 0.0
    %77 = vmatpush1.msra.mxu0 0.0
    %78 = vmatprep.subr.mxu0 0.0
    %79 = vmatpush1.msra.mxu0 0.0
    %80 = vmatprep.subr.mxu0 0.0
    %81 = vmatpush1.msra.mxu0 0.0
    %82 = vmatprep.subr.mxu0 0.0
    %83 = vmatpush1.msra.mxu0 0.0
    %84 = vmatprep.subr.mxu0 0.0
    %85 = vmatpush1.msra.mxu0 0.0
    %86 = vmatprep.subr.mxu0 0.0
    %87 = vmatpush1.msra.mxu0 0.0
    %88 = vmatprep.subr.mxu0 0.0
    %89 = vmatpush1.msra.mxu0 0.0
    %90 = vmatprep.subr.mxu0 0.0
    %91 = vmatpush1.msra.mxu0 0.0
    %92 = vmatprep.subr.mxu0 0.0
    %93 = vmatpush1.msra.mxu0 0.0
    %94 = vmatprep.subr.mxu0 0.0
    %95 = vmatpush1.msra.mxu0 0.0
    %96 = vmatprep.subr.mxu0 0.0
    %97 = vmatpush1.msra.mxu0 0.0
    %98 = vmatprep.subr.mxu0 0.0
    %99 = vmatpush1.msra.mxu0 0.0
    %100 = vmatprep.subr.mxu0 0.0
    %101 = vmatpush1.msra.mxu0 0.0
    %102 = vmatprep.subr.mxu0 0.0
    %103 = vmatpush1.msra.mxu0 0.0
    %104 = vmatprep.subr.mxu0 0.0
    %105 = vmatpush1.msra.mxu0 0.0
    %106 = vmatprep.subr.mxu0 0.0
    %107 = vmatpush1.msra.mxu0 0.0
    %108 = vmatprep.subr.mxu0 0.0
    %109 = vmatpush1.msra.mxu0 0.0
    %110 = vmatprep.subr.mxu0 0.0
    %111 = vmatpush1.msra.mxu0 0.0
    %112 = vmatprep.subr.mxu0 0.0
    %113 = vmatpush1.msra.mxu0 0.0
    %114 = vmatprep.subr.mxu0 0.0
    %115 = vmatpush1.msra.mxu0 0.0
    %116 = vmatprep.subr.mxu0 0.0
    %117 = vmatpush1.msra.mxu0 0.0
    %118 = vmatprep.mubr.f32.mxu0 0.0
    %119 = vmatmul.mubr.f32.gmra.mrb[0].mxu0 %v52
    %v120 = vpop.f32.mrb[0].mxu0
    %v121 = vadd.f32 0.0, %v120
    %v122 = vpop.f32.mrb[0].mxu0
    %123 = vdwg.mxu0
    %v124 = vadd.f32 %v44, %v121
    %vm125 = vcmask 386048
    %126 = vst.msk [vmem:[#allocation7] sm:$0x3] %vm125, %v124
    // Predicated region
    $region22: #{tpu_custom_call.1} parent=1 // pred_check
      %p127 = pneg %p38
    $region23: #{tpu_custom_call.1} parent=1 // pred_check_branch
      %129 = sbr.rel (%p127) target = $region25
    $region24: #{tpu_custom_call.1} parent=1 // pred_region
      %v130 = vld [vmem:[#allocation7] sm:$0x3]
      %vm131 = vcmp.ge.f32.partialorder %v130, 0.0
      %v132 = vmul.f32 %v130, 0.01
      %v133 = vsel %vm131, %v130, %v132
      %134 = vst.msk [vmem:[#allocation7] sm:$0x3] %vm125, %v133
    $region25: #{tpu_custom_call.1} parent=1 // pred_fallthru
      _
    // Predicated region
    $region26: #{tpu_custom_call.1} parent=1 // pred_check
      _
    $region27: #{tpu_custom_call.1} parent=1 // pred_check_branch
      %136 = sbr.rel (0) target = $region29
    $region28: #{tpu_custom_call.1} parent=1 // pred_region
      %s138 = ssub.s32 32, 32
      %139 = vsyncadd [#allocation4], %s138
      %s141 = sshll.u32 [#allocation7], 4
      %s142 = int_to_ptr.vmem [resolvable:$true] %s141
      %144 = dma.vmem_to_hbm [thread:$0]  %s142, 32, %s2, [#allocation4]
    $region29: #{tpu_custom_call.1} parent=1 // pred_fallthru
      _
    // Predicated region
    $region30: #{tpu_custom_call.1} parent=1 // pred_check
      _
    $region31: #{tpu_custom_call.1} parent=1 // pred_check_branch
      %146 = sbr.rel (0) target = $region33
    $region32: #{tpu_custom_call.1} parent=1 // pred_region
      %147 = dma.done [#allocation4], 32
    $region33: #{tpu_custom_call.1} parent=1 // pred_fallthru
      _
    %148 = vsyncpa [#allocation3], 1
    %149 = vsyncpa [#allocation6], 1
    %150 = vsyncpa [#allocation4], 1

</llo_original>
